<compile_context>
chip_gen: v5e
topology: v5e:2x2
jax: 0.10.0
libtpu: 0.0.40
codegen_flags: <defaults>
</compile_context>

<pallas_src>
import jax
import jax.numpy as jnp
from jax import lax
from jax.experimental import pallas as pl
from jax.experimental.pallas import tpu as pltpu

EPS = 1e-5


def _band_matrices(w_hwio, width):
    """(3, 3, C, C) HWIO conv weight -> (3, W*C, W*C) block-banded matrices.

    For each vertical tap dy, B_dy[w'*C+ci, w*C+co] = w_hwio[dy, w'-w+1, ci, co]
    when |w'-w| <= 1, else 0.  Out-of-range horizontal taps are simply absent,
    which reproduces the conv's zero padding along W.
    """
    mats = []
    for dy in range(3):
        m = jnp.zeros((width * w_hwio.shape[2], width * w_hwio.shape[3]), jnp.float32)
        for dx in range(3):
            shift = jnp.eye(width, k=1 - dx, dtype=jnp.float32)   # S[w', w]=1 iff w'=w+dx-1
            m = m + jnp.kron(shift, w_hwio[dy, dx].astype(jnp.float32))
        mats.append(m)
    return jnp.stack(mats, axis=0)


def recurrent_block_forward(x_nchw, params, t=2):
    """Pallas implementation of Recurrent_block.forward; input/output in NCHW."""
    assert t >= 1, "Recurrent_block.forward needs t >= 1"
    N, C, H, W = x_nchw.shape
    WC = W * C
    NH = N * H
    M = N * H * W
    inv_m = 1.0 / float(M)

    w_hwio = params["w"]                                            # (3, 3, C, C)
    bmats = _band_matrices(w_hwio, W)                               # (3, WC, WC)
    # Channel-equality matrix: P[w'*C+c', w*C+c] = 1/M iff c' == c.  rs @ P
    # reduces the W lane-groups of each channel AND broadcasts the per-channel
    # mean back to every lane in one MXU op (1/M already folded in).
    p_mat = jnp.kron(jnp.ones((W, W), jnp.float32),
                     jnp.eye(C, dtype=jnp.float32)) * inv_m
    b_l = jnp.tile(params["b"].astype(jnp.float32), W).reshape(1, WC)
    g_l = jnp.tile(params["g"].astype(jnp.float32), W).reshape(1, WC)
    beta_l = jnp.tile(params["beta"].astype(jnp.float32), W).reshape(1, WC)

    # NCHW -> NHWC -> (N, H, W*C): lane-dense input layout for the kernel.
    x3 = jnp.transpose(x_nchw, (0, 2, 3, 1)).reshape(N, H, WC)

    def kernel(x_ref, bm_ref, p_ref, b_ref, g_ref, bt_ref, o_ref, ap_scr):
        # x_ref  : (N, H, WC)      activation, lanes = fused (W, C)
        # bm_ref : (3, WC, WC)     banded conv matrices, one per vertical tap
        # p_ref  : (WC, WC)        channel mean-reduce/broadcast matrix (pre /M)
        # b/g/bt : (1, WC)         per-lane conv bias, BN gamma, BN beta
        # o_ref  : (N*H, WC)
        # ap_scr : (N, H+2, WC)    H-padded activation scratch, reused by both layers

        def conv_bn_relu(a_nh):                       # a_nh: (NH, WC) f32
            # Write activation into the interior rows; halo rows stay zero.
            ap_scr[:, 1:H + 1, :] = a_nh.reshape(N, H, WC)
            # 3x3 conv: 3 vertical taps, each a banded matmul over the fused
            # (W, C) lane axis (K = WC on the MXU).
            acc = jnp.zeros((NH, WC), jnp.float32)
            for dy in range(3):
                shifted = ap_scr[:, dy:dy + H, :].reshape(NH, WC)
                acc = acc + jnp.dot(shifted, bm_ref[dy],
                                    preferred_element_type=jnp.float32)
            acc = acc + b_ref[...]
            # BatchNorm (training stats), single pass over the conv output:
            # per-lane sum / sum-of-squares, then channel reduce+broadcast.
            rs = jnp.sum(acc, axis=0, keepdims=True)               # (1, WC)
            rss = jnp.sum(acc * acc, axis=0, keepdims=True)        # (1, WC)
            mean = jnp.dot(rs, p_ref[...], preferred_element_type=jnp.float32)
            ex2 = jnp.dot(rss, p_ref[...], preferred_element_type=jnp.float32)
            var = ex2 - mean * mean
            # Fold BN into a per-lane scale/shift so the big tensor only sees
            # one multiply-add + ReLU on the VPU.
            scale = g_ref[...] * lax.rsqrt(var + EPS)               # (1, WC)
            shift = bt_ref[...] - mean * scale                      # (1, WC)
            return jnp.maximum(acc * scale + shift, 0.0)

        ap_scr[...] = jnp.zeros_like(ap_scr)          # zero the halo rows once
        y = conv_bn_relu(x_ref[...].reshape(NH, WC))  # x1 = conv(x)
        y = conv_bn_relu(y + y)                       # out = conv(x1 + x1)
        o_ref[...] = y                                # lane-dense (…,128) store

    out2d = pl.pallas_call(
        kernel,
        out_shape=jax.ShapeDtypeStruct((NH, WC), jnp.float32),
        grid=(1,),
        in_specs=[
            pl.BlockSpec((N, H, WC), lambda i: (0, 0, 0)),
            pl.BlockSpec((3, WC, WC), lambda i: (0, 0, 0)),
            pl.BlockSpec((WC, WC), lambda i: (0, 0)),
            pl.BlockSpec((1, WC), lambda i: (0, 0)),
            pl.BlockSpec((1, WC), lambda i: (0, 0)),
            pl.BlockSpec((1, WC), lambda i: (0, 0)),
        ],
        out_specs=pl.BlockSpec((NH, WC), lambda i: (0, 0)),
        scratch_shapes=[pltpu.VMEM((N, H + 2, WC), jnp.float32)],
        compiler_params=pltpu.CompilerParams(
            dimension_semantics=("arbitrary",),
            vmem_limit_bytes=32 * 1024 * 1024,
        ),
    )(x3, bmats, p_mat, b_l, g_l, beta_l)

    # (N*H, W*C) -> NHWC -> NCHW
    return jnp.transpose(out2d.reshape(N, H, W, C), (0, 3, 1, 2))


def _reference_forward(x_nchw, params):
    """Pure-JAX reference (lax conv + training-mode BN + ReLU), PyTorch semantics."""
    w_hwio = params["w"]
    C = params["b"].shape[0]

    def layer(x):
        y = lax.conv_general_dilated(
            x, w_hwio, window_strides=(1, 1), padding="SAME",
            dimension_numbers=("NCHW", "HWIO", "NCHW"),
            precision=lax.Precision.HIGHEST)
        y = y + params["b"].reshape(1, C, 1, 1)
        mean = jnp.mean(y, axis=(0, 2, 3), keepdims=True)
        var = jnp.mean((y - mean) ** 2, axis=(0, 2, 3), keepdims=True)
        y = (y - mean) * lax.rsqrt(var + EPS)
        y = y * params["g"].reshape(1, C, 1, 1) + params["beta"].reshape(1, C, 1, 1)
        return jnp.maximum(y, 0.0)

    x1 = layer(x_nchw)
    return layer(x1 + x1)


def init_params(key, out_ch):
    """Deterministic synthetic init matching nn.Conv2d / nn.BatchNorm2d defaults."""
    k1, k2 = jax.random.split(key)
    s = 1.0 / jnp.sqrt(out_ch * 9.0)
    return {
        "w": jax.random.uniform(k1, (3, 3, out_ch, out_ch), jnp.float32, -s, s),  # HWIO
        "b": jax.random.uniform(k2, (out_ch,), jnp.float32, -s, s),
        "g": jnp.ones((out_ch,), jnp.float32),        # BN weight init
        "beta": jnp.zeros((out_ch,), jnp.float32),    # BN bias init
    }


if __name__ == "__main__":
    key = jax.random.PRNGKey(0)
    kx, kp = jax.random.split(key)

    # Recurrent_block(out_ch=8, t=2); NCHW input like PyTorch. W*C = 128 lanes.
    N, C, H, W = 2, 8, 16, 16
    x = jax.random.normal(kx, (N, C, H, W), jnp.float32)
    params = init_params(kp, C)

    out = jax.block_until_ready(recurrent_block_forward(x, params, t=2))
    assert out.shape == (N, C, H, W), out.shape

    ref = jax.block_until_ready(_reference_forward(x, params))
    max_err = float(jnp.max(jnp.abs(out - ref)))
    assert jnp.allclose(out, ref, atol=5e-4, rtol=5e-4), max_err

    print("KERNEL_OK")
</pallas_src>

<mosaic_0001>
module attributes {stable_mosaic.version = 11 : i64} {
  func.func @kernel(%arg0: i32, %arg1: memref<2x16x128xf32, #tpu.memory_space<vmem>>, %arg2: memref<3x128x128xf32, #tpu.memory_space<vmem>>, %arg3: memref<128x128xf32, #tpu.memory_space<vmem>>, %arg4: memref<1x128xf32, #tpu.memory_space<vmem>>, %arg5: memref<1x128xf32, #tpu.memory_space<vmem>>, %arg6: memref<1x128xf32, #tpu.memory_space<vmem>>, %arg7: memref<32x128xf32, #tpu.memory_space<vmem>>, %arg8: memref<2x18x128xf32, #tpu.memory_space<vmem>>) attributes {dimension_semantics = [#tpu.dimension_semantics<arbitrary>], iteration_bounds = array<i64: 1>, scalar_prefetch = 0 : i64, scratch_operands = 1 : i64, tpu.core_type = #tpu.core_type<tc>, window_params = [{pipeline_mode = #tpu.pipeline_mode<synchronous>, transform_indices = @transform_0, window_bounds = array<i64: 2, 16, 128>}, {pipeline_mode = #tpu.pipeline_mode<synchronous>, transform_indices = @transform_1, window_bounds = array<i64: 3, 128, 128>}, {pipeline_mode = #tpu.pipeline_mode<synchronous>, transform_indices = @transform_2, window_bounds = array<i64: 128, 128>}, {pipeline_mode = #tpu.pipeline_mode<synchronous>, transform_indices = @transform_3, window_bounds = array<i64: 1, 128>}, {pipeline_mode = #tpu.pipeline_mode<synchronous>, transform_indices = @transform_4, window_bounds = array<i64: 1, 128>}, {pipeline_mode = #tpu.pipeline_mode<synchronous>, transform_indices = @transform_5, window_bounds = array<i64: 1, 128>}, {pipeline_mode = #tpu.pipeline_mode<synchronous>, transform_indices = @transform_6, window_bounds = array<i64: 32, 128>}]} {
    %cst = arith.constant 0.000000e+00 : f32
    %0 = vector.broadcast %cst : f32 to vector<2x18x128xf32>
    %c0 = arith.constant 0 : index
    %c0_0 = arith.constant 0 : index
    %c0_1 = arith.constant 0 : index
    %1 = vector.load %arg8[%c0, %c0_0, %c0_1] : memref<2x18x128xf32, #tpu.memory_space<vmem>>, vector<2x18x128xf32>
    tpu.vector_store %arg8[%c0, %c0_0, %c0_1], %0 {strides = array<i32>} : memref<2x18x128xf32, #tpu.memory_space<vmem>>, vector<2x18x128xf32>,
    %c0_2 = arith.constant 0 : index
    %c0_3 = arith.constant 0 : index
    %c0_4 = arith.constant 0 : index
    %2 = vector.load %arg1[%c0_2, %c0_3, %c0_4] : memref<2x16x128xf32, #tpu.memory_space<vmem>>, vector<2x16x128xf32>
    %3 = vector.shape_cast %2 : vector<2x16x128xf32> to vector<32x128xf32>
    %4 = vector.shape_cast %3 : vector<32x128xf32> to vector<2x16x128xf32>
    %c0_5 = arith.constant 0 : index
    %c1 = arith.constant 1 : index
    %c0_6 = arith.constant 0 : index
    %5 = vector.load %arg8[%c0_5, %c1, %c0_6] : memref<2x18x128xf32, #tpu.memory_space<vmem>>, vector<2x16x128xf32>
    tpu.vector_store %arg8[%c0_5, %c1, %c0_6], %4 {strides = array<i32>} : memref<2x18x128xf32, #tpu.memory_space<vmem>>, vector<2x16x128xf32>,
    %cst_7 = arith.constant 0.000000e+00 : f32
    %6 = vector.broadcast %cst_7 : f32 to vector<32x128xf32>
    %c0_8 = arith.constant 0 : index
    %c0_9 = arith.constant 0 : index
    %c0_10 = arith.constant 0 : index
    %7 = vector.load %arg8[%c0_8, %c0_9, %c0_10] : memref<2x18x128xf32, #tpu.memory_space<vmem>>, vector<2x16x128xf32>
    %8 = vector.shape_cast %7 : vector<2x16x128xf32> to vector<32x128xf32>
    %c0_11 = arith.constant 0 : index
    %c0_12 = arith.constant 0 : index
    %c0_13 = arith.constant 0 : index
    %9 = vector.load %arg2[%c0_11, %c0_12, %c0_13] : memref<3x128x128xf32, #tpu.memory_space<vmem>>, vector<1x128x128xf32>
    %10 = vector.shape_cast %9 : vector<1x128x128xf32> to vector<128x128xf32>
    %cst_14 = arith.constant dense<0.000000e+00> : vector<32x128xf32>
    %11 = tpu.matmul %8, %10, %cst_14 {dimension_numbers = #tpu.dot_dimension_numbers<[1], [0], [0], [1], [0, 0, 1, 1], [], []>} : vector<32x128xf32>, vector<128x128xf32>, vector<32x128xf32> -> vector<32x128xf32>
    %12 = arith.addf %6, %11 : vector<32x128xf32>
    %c0_15 = arith.constant 0 : index
    %c1_16 = arith.constant 1 : index
    %c0_17 = arith.constant 0 : index
    %13 = vector.load %arg8[%c0_15, %c1_16, %c0_17] : memref<2x18x128xf32, #tpu.memory_space<vmem>>, vector<2x16x128xf32>
    %14 = vector.shape_cast %13 : vector<2x16x128xf32> to vector<32x128xf32>
    %c1_18 = arith.constant 1 : index
    %c0_19 = arith.constant 0 : index
    %c0_20 = arith.constant 0 : index
    %15 = vector.load %arg2[%c1_18, %c0_19, %c0_20] : memref<3x128x128xf32, #tpu.memory_space<vmem>>, vector<1x128x128xf32>
    %16 = vector.shape_cast %15 : vector<1x128x128xf32> to vector<128x128xf32>
    %cst_21 = arith.constant dense<0.000000e+00> : vector<32x128xf32>
    %17 = tpu.matmul %14, %16, %cst_21 {dimension_numbers = #tpu.dot_dimension_numbers<[1], [0], [0], [1], [0, 0, 1, 1], [], []>} : vector<32x128xf32>, vector<128x128xf32>, vector<32x128xf32> -> vector<32x128xf32>
    %18 = arith.addf %12, %17 : vector<32x128xf32>
    %c0_22 = arith.constant 0 : index
    %c2 = arith.constant 2 : index
    %c0_23 = arith.constant 0 : index
    %19 = vector.load %arg8[%c0_22, %c2, %c0_23] : memref<2x18x128xf32, #tpu.memory_space<vmem>>, vector<2x16x128xf32>
    %20 = vector.shape_cast %19 : vector<2x16x128xf32> to vector<32x128xf32>
    %c2_24 = arith.constant 2 : index
    %c0_25 = arith.constant 0 : index
    %c0_26 = arith.constant 0 : index
    %21 = vector.load %arg2[%c2_24, %c0_25, %c0_26] : memref<3x128x128xf32, #tpu.memory_space<vmem>>, vector<1x128x128xf32>
    %22 = vector.shape_cast %21 : vector<1x128x128xf32> to vector<128x128xf32>
    %cst_27 = arith.constant dense<0.000000e+00> : vector<32x128xf32>
    %23 = tpu.matmul %20, %22, %cst_27 {dimension_numbers = #tpu.dot_dimension_numbers<[1], [0], [0], [1], [0, 0, 1, 1], [], []>} : vector<32x128xf32>, vector<128x128xf32>, vector<32x128xf32> -> vector<32x128xf32>
    %24 = arith.addf %18, %23 : vector<32x128xf32>
    %c0_28 = arith.constant 0 : index
    %c0_29 = arith.constant 0 : index
    %25 = vector.load %arg4[%c0_28, %c0_29] : memref<1x128xf32, #tpu.memory_space<vmem>>, vector<1x128xf32>
    %26 = vector.broadcast %25 : vector<1x128xf32> to vector<32x128xf32>
    %27 = arith.addf %24, %26 : vector<32x128xf32>
    %cst_30 = arith.constant dense<0.000000e+00> : vector<128xf32>
    %28 = vector.multi_reduction <add>, %27, %cst_30 [0] : vector<32x128xf32> to vector<128xf32>
    %29 = vector.shape_cast %28 : vector<128xf32> to vector<1x128xf32>
    %30 = arith.mulf %27, %27 : vector<32x128xf32>
    %cst_31 = arith.constant dense<0.000000e+00> : vector<128xf32>
    %31 = vector.multi_reduction <add>, %30, %cst_31 [0] : vector<32x128xf32> to vector<128xf32>
    %32 = vector.shape_cast %31 : vector<128xf32> to vector<1x128xf32>
    %c0_32 = arith.constant 0 : index
    %c0_33 = arith.constant 0 : index
    %33 = vector.load %arg3[%c0_32, %c0_33] : memref<128x128xf32, #tpu.memory_space<vmem>>, vector<128x128xf32>
    %cst_34 = arith.constant dense<0.000000e+00> : vector<1x128xf32>
    %34 = tpu.matmul %29, %33, %cst_34 {dimension_numbers = #tpu.dot_dimension_numbers<[1], [0], [0], [1], [0, 0, 1, 1], [], []>} : vector<1x128xf32>, vector<128x128xf32>, vector<1x128xf32> -> vector<1x128xf32>
    %c0_35 = arith.constant 0 : index
    %c0_36 = arith.constant 0 : index
    %35 = vector.load %arg3[%c0_35, %c0_36] : memref<128x128xf32, #tpu.memory_space<vmem>>, vector<128x128xf32>
    %cst_37 = arith.constant dense<0.000000e+00> : vector<1x128xf32>
    %36 = tpu.matmul %32, %35, %cst_37 {dimension_numbers = #tpu.dot_dimension_numbers<[1], [0], [0], [1], [0, 0, 1, 1], [], []>} : vector<1x128xf32>, vector<128x128xf32>, vector<1x128xf32> -> vector<1x128xf32>
    %37 = arith.mulf %34, %34 : vector<1x128xf32>
    %38 = arith.subf %36, %37 : vector<1x128xf32>
    %c0_38 = arith.constant 0 : index
    %c0_39 = arith.constant 0 : index
    %39 = vector.load %arg5[%c0_38, %c0_39] : memref<1x128xf32, #tpu.memory_space<vmem>>, vector<1x128xf32>
    %cst_40 = arith.constant 9.99999974E-6 : f32
    %40 = vector.broadcast %cst_40 : f32 to vector<1x128xf32>
    %41 = arith.addf %38, %40 : vector<1x128xf32>
    %42 = math.rsqrt %41 : vector<1x128xf32>
    %43 = arith.mulf %39, %42 : vector<1x128xf32>
    %c0_41 = arith.constant 0 : index
    %c0_42 = arith.constant 0 : index
    %44 = vector.load %arg6[%c0_41, %c0_42] : memref<1x128xf32, #tpu.memory_space<vmem>>, vector<1x128xf32>
    %45 = arith.mulf %34, %43 : vector<1x128xf32>
    %46 = arith.subf %44, %45 : vector<1x128xf32>
    %47 = vector.broadcast %43 : vector<1x128xf32> to vector<32x128xf32>
    %48 = arith.mulf %27, %47 : vector<32x128xf32>
    %49 = vector.broadcast %46 : vector<1x128xf32> to vector<32x128xf32>
    %50 = arith.addf %48, %49 : vector<32x128xf32>
    %cst_43 = arith.constant 0.000000e+00 : f32
    %51 = vector.broadcast %cst_43 : f32 to vector<32x128xf32>
    %52 = arith.maximumf %50, %51 : vector<32x128xf32>
    %53 = arith.addf %52, %52 : vector<32x128xf32>
    %54 = vector.shape_cast %53 : vector<32x128xf32> to vector<2x16x128xf32>
    %c0_44 = arith.constant 0 : index
    %c1_45 = arith.constant 1 : index
    %c0_46 = arith.constant 0 : index
    %55 = vector.load %arg8[%c0_44, %c1_45, %c0_46] : memref<2x18x128xf32, #tpu.memory_space<vmem>>, vector<2x16x128xf32>
    tpu.vector_store %arg8[%c0_44, %c1_45, %c0_46], %54 {strides = array<i32>} : memref<2x18x128xf32, #tpu.memory_space<vmem>>, vector<2x16x128xf32>,
    %cst_47 = arith.constant 0.000000e+00 : f32
    %56 = vector.broadcast %cst_47 : f32 to vector<32x128xf32>
    %c0_48 = arith.constant 0 : index
    %c0_49 = arith.constant 0 : index
    %c0_50 = arith.constant 0 : index
    %57 = vector.load %arg8[%c0_48, %c0_49, %c0_50] : memref<2x18x128xf32, #tpu.memory_space<vmem>>, vector<2x16x128xf32>
    %58 = vector.shape_cast %57 : vector<2x16x128xf32> to vector<32x128xf32>
    %c0_51 = arith.constant 0 : index
    %c0_52 = arith.constant 0 : index
    %c0_53 = arith.constant 0 : index
    %59 = vector.load %arg2[%c0_51, %c0_52, %c0_53] : memref<3x128x128xf32, #tpu.memory_space<vmem>>, vector<1x128x128xf32>
    %60 = vector.shape_cast %59 : vector<1x128x128xf32> to vector<128x128xf32>
    %cst_54 = arith.constant dense<0.000000e+00> : vector<32x128xf32>
    %61 = tpu.matmul %58, %60, %cst_54 {dimension_numbers = #tpu.dot_dimension_numbers<[1], [0], [0], [1], [0, 0, 1, 1], [], []>} : vector<32x128xf32>, vector<128x128xf32>, vector<32x128xf32> -> vector<32x128xf32>
    %62 = arith.addf %56, %61 : vector<32x128xf32>
    %c0_55 = arith.constant 0 : index
    %c1_56 = arith.constant 1 : index
    %c0_57 = arith.constant 0 : index
    %63 = vector.load %arg8[%c0_55, %c1_56, %c0_57] : memref<2x18x128xf32, #tpu.memory_space<vmem>>, vector<2x16x128xf32>
    %64 = vector.shape_cast %63 : vector<2x16x128xf32> to vector<32x128xf32>
    %c1_58 = arith.constant 1 : index
    %c0_59 = arith.constant 0 : index
    %c0_60 = arith.constant 0 : index
    %65 = vector.load %arg2[%c1_58, %c0_59, %c0_60] : memref<3x128x128xf32, #tpu.memory_space<vmem>>, vector<1x128x128xf32>
    %66 = vector.shape_cast %65 : vector<1x128x128xf32> to vector<128x128xf32>
    %cst_61 = arith.constant dense<0.000000e+00> : vector<32x128xf32>
    %67 = tpu.matmul %64, %66, %cst_61 {dimension_numbers = #tpu.dot_dimension_numbers<[1], [0], [0], [1], [0, 0, 1, 1], [], []>} : vector<32x128xf32>, vector<128x128xf32>, vector<32x128xf32> -> vector<32x128xf32>
    %68 = arith.addf %62, %67 : vector<32x128xf32>
    %c0_62 = arith.constant 0 : index
    %c2_63 = arith.constant 2 : index
    %c0_64 = arith.constant 0 : index
    %69 = vector.load %arg8[%c0_62, %c2_63, %c0_64] : memref<2x18x128xf32, #tpu.memory_space<vmem>>, vector<2x16x128xf32>
    %70 = vector.shape_cast %69 : vector<2x16x128xf32> to vector<32x128xf32>
    %c2_65 = arith.constant 2 : index
    %c0_66 = arith.constant 0 : index
    %c0_67 = arith.constant 0 : index
    %71 = vector.load %arg2[%c2_65, %c0_66, %c0_67] : memref<3x128x128xf32, #tpu.memory_space<vmem>>, vector<1x128x128xf32>
    %72 = vector.shape_cast %71 : vector<1x128x128xf32> to vector<128x128xf32>
    %cst_68 = arith.constant dense<0.000000e+00> : vector<32x128xf32>
    %73 = tpu.matmul %70, %72, %cst_68 {dimension_numbers = #tpu.dot_dimension_numbers<[1], [0], [0], [1], [0, 0, 1, 1], [], []>} : vector<32x128xf32>, vector<128x128xf32>, vector<32x128xf32> -> vector<32x128xf32>
    %74 = arith.addf %68, %73 : vector<32x128xf32>
    %c0_69 = arith.constant 0 : index
    %c0_70 = arith.constant 0 : index
    %75 = vector.load %arg4[%c0_69, %c0_70] : memref<1x128xf32, #tpu.memory_space<vmem>>, vector<1x128xf32>
    %76 = vector.broadcast %75 : vector<1x128xf32> to vector<32x128xf32>
    %77 = arith.addf %74, %76 : vector<32x128xf32>
    %cst_71 = arith.constant dense<0.000000e+00> : vector<128xf32>
    %78 = vector.multi_reduction <add>, %77, %cst_71 [0] : vector<32x128xf32> to vector<128xf32>
    %79 = vector.shape_cast %78 : vector<128xf32> to vector<1x128xf32>
    %80 = arith.mulf %77, %77 : vector<32x128xf32>
    %cst_72 = arith.constant dense<0.000000e+00> : vector<128xf32>
    %81 = vector.multi_reduction <add>, %80, %cst_72 [0] : vector<32x128xf32> to vector<128xf32>
    %82 = vector.shape_cast %81 : vector<128xf32> to vector<1x128xf32>
    %c0_73 = arith.constant 0 : index
    %c0_74 = arith.constant 0 : index
    %83 = vector.load %arg3[%c0_73, %c0_74] : memref<128x128xf32, #tpu.memory_space<vmem>>, vector<128x128xf32>
    %cst_75 = arith.constant dense<0.000000e+00> : vector<1x128xf32>
    %84 = tpu.matmul %79, %83, %cst_75 {dimension_numbers = #tpu.dot_dimension_numbers<[1], [0], [0], [1], [0, 0, 1, 1], [], []>} : vector<1x128xf32>, vector<128x128xf32>, vector<1x128xf32> -> vector<1x128xf32>
    %c0_76 = arith.constant 0 : index
    %c0_77 = arith.constant 0 : index
    %85 = vector.load %arg3[%c0_76, %c0_77] : memref<128x128xf32, #tpu.memory_space<vmem>>, vector<128x128xf32>
    %cst_78 = arith.constant dense<0.000000e+00> : vector<1x128xf32>
    %86 = tpu.matmul %82, %85, %cst_78 {dimension_numbers = #tpu.dot_dimension_numbers<[1], [0], [0], [1], [0, 0, 1, 1], [], []>} : vector<1x128xf32>, vector<128x128xf32>, vector<1x128xf32> -> vector<1x128xf32>
    %87 = arith.mulf %84, %84 : vector<1x128xf32>
    %88 = arith.subf %86, %87 : vector<1x128xf32>
    %c0_79 = arith.constant 0 : index
    %c0_80 = arith.constant 0 : index
    %89 = vector.load %arg5[%c0_79, %c0_80] : memref<1x128xf32, #tpu.memory_space<vmem>>, vector<1x128xf32>
    %cst_81 = arith.constant 9.99999974E-6 : f32
    %90 = vector.broadcast %cst_81 : f32 to vector<1x128xf32>
    %91 = arith.addf %88, %90 : vector<1x128xf32>
    %92 = math.rsqrt %91 : vector<1x128xf32>
    %93 = arith.mulf %89, %92 : vector<1x128xf32>
    %c0_82 = arith.constant 0 : index
    %c0_83 = arith.constant 0 : index
    %94 = vector.load %arg6[%c0_82, %c0_83] : memref<1x128xf32, #tpu.memory_space<vmem>>, vector<1x128xf32>
    %95 = arith.mulf %84, %93 : vector<1x128xf32>
    %96 = arith.subf %94, %95 : vector<1x128xf32>
    %97 = vector.broadcast %93 : vector<1x128xf32> to vector<32x128xf32>
    %98 = arith.mulf %77, %97 : vector<32x128xf32>
    %99 = vector.broadcast %96 : vector<1x128xf32> to vector<32x128xf32>
    %100 = arith.addf %98, %99 : vector<32x128xf32>
    %cst_84 = arith.constant 0.000000e+00 : f32
    %101 = vector.broadcast %cst_84 : f32 to vector<32x128xf32>
    %102 = arith.maximumf %100, %101 : vector<32x128xf32>
    %c0_85 = arith.constant 0 : index
    %c0_86 = arith.constant 0 : index
    %103 = vector.load %arg7[%c0_85, %c0_86] : memref<32x128xf32, #tpu.memory_space<vmem>>, vector<32x128xf32>
    tpu.vector_store %arg7[%c0_85, %c0_86], %102 {strides = array<i32>} : memref<32x128xf32, #tpu.memory_space<vmem>>, vector<32x128xf32>,
    return
  }
  func.func @transform_0(%arg0: i32) -> (i32, i32, i32) {
    %c0_i32 = arith.constant 0 : i32
    %c0_i32_0 = arith.constant 0 : i32
    %c0_i32_1 = arith.constant 0 : i32
    %c0_i32_2 = arith.constant 0 : i32
    return %c0_i32, %c0_i32_0, %c0_i32_1 : i32, i32, i32
  }
  func.func @transform_1(%arg0: i32) -> (i32, i32, i32) {
    %c0_i32 = arith.constant 0 : i32
    %c0_i32_0 = arith.constant 0 : i32
    %c0_i32_1 = arith.constant 0 : i32
    %c0_i32_2 = arith.constant 0 : i32
    return %c0_i32, %c0_i32_0, %c0_i32_1 : i32, i32, i32
  }
  func.func @transform_2(%arg0: i32) -> (i32, i32) {
    %c0_i32 = arith.constant 0 : i32
    %c0_i32_0 = arith.constant 0 : i32
    %c0_i32_1 = arith.constant 0 : i32
    return %c0_i32, %c0_i32_0 : i32, i32
  }
  func.func @transform_3(%arg0: i32) -> (i32, i32) {
    %c0_i32 = arith.constant 0 : i32
    %c0_i32_0 = arith.constant 0 : i32
    %c0_i32_1 = arith.constant 0 : i32
    return %c0_i32, %c0_i32_0 : i32, i32
  }
  func.func @transform_4(%arg0: i32) -> (i32, i32) {
    %c0_i32 = arith.constant 0 : i32
    %c0_i32_0 = arith.constant 0 : i32
    %c0_i32_1 = arith.constant 0 : i32
    return %c0_i32, %c0_i32_0 : i32, i32
  }
  func.func @transform_5(%arg0: i32) -> (i32, i32) {
    %c0_i32 = arith.constant 0 : i32
    %c0_i32_0 = arith.constant 0 : i32
    %c0_i32_1 = arith.constant 0 : i32
    return %c0_i32, %c0_i32_0 : i32, i32
  }
  func.func @transform_6(%arg0: i32) -> (i32, i32) {
    %c0_i32 = arith.constant 0 : i32
    %c0_i32_0 = arith.constant 0 : i32
    %c0_i32_1 = arith.constant 0 : i32
    return %c0_i32, %c0_i32_0 : i32, i32
  }
}

</mosaic_0001>

<llo_original>
// kernel: tpu_custom_call.1
$region0: #{tpu_custom_call.1}
  #allocation0 [shape = 'u32[]', space=smem, size = 0x4, offset = 0x4, fixed_abs, tag = 'smem constant byte address 0x4 - core index']
  #allocation1 [shape = 'u32[72,128]{1,0:T(1,128)}', space=vmem, size = 0x9000, scoped, tag = 'internal scratch']
  #allocation2 [shape = 'f32[2,18,128]{2,1,0:T(8,128)}', space=vmem, size = 0x6000, scoped, tag = 'scratch operand']
  %s0 = inlined_call_operand.hbm [shape: f32[2,16,128], index: 0, kind: input, shape index: {}]
  %s1 = inlined_call_operand.hbm [shape: f32[3,128,128], index: 1, kind: input, shape index: {}]
  %s2 = inlined_call_operand.hbm [shape: f32[128,128], index: 2, kind: input, shape index: {}]
  %s3 = inlined_call_operand.vmem [shape: f32[1,128], index: 3, kind: input, shape index: {}]
  %s4 = inlined_call_operand.vmem [shape: f32[1,128], index: 4, kind: input, shape index: {}]
  %s5 = inlined_call_operand.vmem [shape: f32[1,128], index: 5, kind: input, shape index: {}]
  %s6 = inlined_call_operand.hbm [shape: f32[32,128], index: 6, kind: output, shape index: {}]
  %s7 = sld [smem:[#allocation0]]
  $region46: #{tpu_custom_call.1} parent=0
    _
  %s9 = ssub.s32 1, %s7
  %s10 = scalar_select 0, %s9, %s7
  $region1: #{tpu_custom_call.1} parent=0
    #allocation3 [shape = 'u8[16384]{0}', space=vmem, size = 0x4000, scoped, tag = 'input window, operand 0, single buffered']
    #allocation4 [shape = 's32[1]{0}', space=sflag, size = 0x4, scoped, tag = 'scoped memory for tpu_custom_call.1']
    #allocation5 [shape = 's32[1]{0}', space=sflag, size = 0x4, scoped, tag = 'scoped memory for tpu_custom_call.1']
    #allocation6 [shape = 'u8[196608]{0}', space=vmem, size = 0x30000, scoped, tag = 'input window, operand 1, single buffered']
    #allocation7 [shape = 's32[1]{0}', space=sflag, size = 0x4, scoped, tag = 'scoped memory for tpu_custom_call.1']
    #allocation8 [shape = 'u8[65536]{0}', space=vmem, size = 0x10000, scoped, tag = 'input window, operand 2, single buffered']
    #allocation9 [shape = 'u8[16384]{0}', space=vmem, size = 0x4000, scoped, tag = 'output window, operand 0, single buffered']
    %11 = vsyncpa [#allocation4], 0
    %12 = vsyncpa [#allocation7], 0
    %13 = vsyncpa [#allocation5], 0
    // Predicated region
    $region2: #{tpu_custom_call.1} parent=1 // pred_check
      _
    $region3: #{tpu_custom_call.1} parent=1 // pred_check_branch
      %15 = sbr.rel (0) target = $region5
    $region4: #{tpu_custom_call.1} parent=1 // pred_region
      %17 = vsyncadd [#allocation4], 0
      %s18 = sshll.u32 %s0, 4
      %s19 = int_to_ptr.hbm [resolvable:$true] %s18
      %s20 = sshll.u32 [#allocation3], 4
      %s21 = int_to_ptr.vmem [resolvable:$true] %s20
      %26 = dma.hbm_to_vmem [thread:$0]  %s19, 512, %s21, [#allocation4], 128, 128, 8
    $region5: #{tpu_custom_call.1} parent=1 // pred_fallthru
      _
    // Predicated region
    $region6: #{tpu_custom_call.1} parent=1 // pred_check
      _
    $region7: #{tpu_custom_call.1} parent=1 // pred_check_branch
      %28 = sbr.rel (0) target = $region9
    $region8: #{tpu_custom_call.1} parent=1 // pred_region
      %30 = vsyncadd [#allocation7], 0
      %s31 = sshll.u32 %s1, 4
      %s32 = int_to_ptr.hbm [resolvable:$true] %s31
      %s33 = sshll.u32 [#allocation6], 4
      %s34 = int_to_ptr.vmem [resolvable:$true] %s33
      %39 = dma.hbm_to_vmem [thread:$0]  %s32, 6144, %s34, [#allocation7], 128, 128, 8
    $region9: #{tpu_custom_call.1} parent=1 // pred_fallthru
      _
    // Predicated region
    $region10: #{tpu_custom_call.1} parent=1 // pred_check
      _
    $region11: #{tpu_custom_call.1} parent=1 // pred_check_branch
      %41 = sbr.rel (0) target = $region13
    $region12: #{tpu_custom_call.1} parent=1 // pred_region
      %43 = vsyncadd [#allocation7], 0
      %s44 = sshll.u32 %s2, 4
      %s45 = int_to_ptr.hbm [resolvable:$true] %s44
      %s46 = sshll.u32 [#allocation8], 4
      %s47 = int_to_ptr.vmem [resolvable:$true] %s46
      %52 = dma.hbm_to_vmem [thread:$0]  %s45, 2048, %s47, [#allocation7], 128, 128, 8
    $region13: #{tpu_custom_call.1} parent=1 // pred_fallthru
      _
    // Predicated region
    $region14: #{tpu_custom_call.1} parent=1 // pred_check
      _
    $region15: #{tpu_custom_call.1} parent=1 // pred_check_branch
      %54 = sbr.rel (0) target = $region17
    $region16: #{tpu_custom_call.1} parent=1 // pred_region
      _
    $region17: #{tpu_custom_call.1} parent=1 // pred_fallthru
      _
    // Predicated region
    $region18: #{tpu_custom_call.1} parent=1 // pred_check
      _
    $region19: #{tpu_custom_call.1} parent=1 // pred_check_branch
      %56 = sbr.rel (0) target = $region21
    $region20: #{tpu_custom_call.1} parent=1 // pred_region
      _
    $region21: #{tpu_custom_call.1} parent=1 // pred_fallthru
      _
    // Predicated region
    $region22: #{tpu_custom_call.1} parent=1 // pred_check
      _
    $region23: #{tpu_custom_call.1} parent=1 // pred_check_branch
      %58 = sbr.rel (0) target = $region25
    $region24: #{tpu_custom_call.1} parent=1 // pred_region
      _
    $region25: #{tpu_custom_call.1} parent=1 // pred_fallthru
      _
    // Predicated region
    $region26: #{tpu_custom_call.1} parent=1 // pred_check
      _
    $region27: #{tpu_custom_call.1} parent=1 // pred_check_branch
      %60 = sbr.rel (0) target = $region29
    $region28: #{tpu_custom_call.1} parent=1 // pred_region
      %62 = dma.done [#allocation4], 512
    $region29: #{tpu_custom_call.1} parent=1 // pred_fallthru
      _
    // Predicated region
    $region30: #{tpu_custom_call.1} parent=1 // pred_check
      _
    $region31: #{tpu_custom_call.1} parent=1 // pred_check_branch
      %64 = sbr.rel (0) target = $region33
    $region32: #{tpu_custom_call.1} parent=1 // pred_region
      %66 = dma.done [#allocation7], 6144
    $region33: #{tpu_custom_call.1} parent=1 // pred_fallthru
      _
    // Predicated region
    $region34: #{tpu_custom_call.1} parent=1 // pred_check
      _
    $region35: #{tpu_custom_call.1} parent=1 // pred_check_branch
      %68 = sbr.rel (0) target = $region37
    $region36: #{tpu_custom_call.1} parent=1 // pred_region
      %70 = dma.done [#allocation7], 2048
    $region37: #{tpu_custom_call.1} parent=1 // pred_fallthru
      _
    %71 = vst [vmem:[#allocation2] sm:$0xff] 0.0
    %72 = vst [vmem:[#allocation2 + $0x8] sm:$0xff] 0.0
    %73 = vst [vmem:[#allocation2 + $0x10] sm:$0x3] 0.0
    %74 = vst [vmem:[#allocation2 + $0x18] sm:$0xff] 0.0
    %75 = vst [vmem:[#allocation2 + $0x20] sm:$0xff] 0.0
    %76 = vst [vmem:[#allocation2 + $0x28] sm:$0x3] 0.0
    %v77 = vld [vmem:[#allocation3] sm:$0xff]
    %v78 = vld [vmem:[#allocation3 + $0x8] sm:$0xff]
    %v79 = vld [vmem:[#allocation3 + $0x10] sm:$0xff]
    %v80 = vld [vmem:[#allocation3 + $0x18] sm:$0xff]
    %81 = vst [vmem:[#allocation2 + $0x1] sm:$0xff] %v77
    %82 = vst [vmem:[#allocation2 + $0x9] sm:$0xff] %v78
    %83 = vst [vmem:[#allocation2 + $0x19] sm:$0xff] %v79
    %84 = vst [vmem:[#allocation2 + $0x21] sm:$0xff] %v80
    %v85 = vld [vmem:[#allocation2] sm:$0xff]
    %v86 = vld [vmem:[#allocation2 + $0x8] sm:$0xff]
    %v87 = vld [vmem:[#allocation2 + $0x18] sm:$0xff]
    %v88 = vld [vmem:[#allocation2 + $0x20] sm:$0xff]
    %v89 = vld [vmem:[#allocation6] sm:$0xff]
    %v90 = vld [vmem:[#allocation6 + $0x8] sm:$0xff]
    %v91 = vld [vmem:[#allocation6 + $0x10] sm:$0xff]
    %v92 = vld [vmem:[#allocation6 + $0x18] sm:$0xff]
    %v93 = vld [vmem:[#allocation6 + $0x20] sm:$0xff]
    %v94 = vld [vmem:[#allocation6 + $0x28] sm:$0xff]
    %v95 = vld [vmem:[#allocation6 + $0x30] sm:$0xff]
    %v96 = vld [vmem:[#allocation6 + $0x38] sm:$0xff]
    %v97 = vld [vmem:[#allocation6 + $0x40] sm:$0xff]
    %v98 = vld [vmem:[#allocation6 + $0x48] sm:$0xff]
    %v99 = vld [vmem:[#allocation6 + $0x50] sm:$0xff]
    %v100 = vld [vmem:[#allocation6 + $0x58] sm:$0xff]
    %v101 = vld [vmem:[#allocation6 + $0x60] sm:$0xff]
    %v102 = vld [vmem:[#allocation6 + $0x68] sm:$0xff]
    %v103 = vld [vmem:[#allocation6 + $0x70] sm:$0xff]
    %v104 = vld [vmem:[#allocation6 + $0x78] sm:$0xff]
    %v105 = vld [vmem:[#allocation2 + $0x1] sm:$0xff]
    %v106 = vld [vmem:[#allocation2 + $0x9] sm:$0xff]
    %v107 = vld [vmem:[#allocation2 + $0x19] sm:$0xff]
    %v108 = vld [vmem:[#allocation2 + $0x21] sm:$0xff]
    %s109 = scalar_lea.vmem [#allocation6], 128
    %v110 = vld [vmem:[%s109] sm:$0xff]
    %v111 = vld [vmem:[%s109 + $0x8] sm:$0xff]
    %v112 = vld [vmem:[%s109 + $0x10] sm:$0xff]
    %v113 = vld [vmem:[%s109 + $0x18] sm:$0xff]
    %v114 = vld [vmem:[%s109 + $0x20] sm:$0xff]
    %v115 = vld [vmem:[%s109 + $0x28] sm:$0xff]
    %v116 = vld [vmem:[%s109 + $0x30] sm:$0xff]
    %v117 = vld [vmem:[%s109 + $0x38] sm:$0xff]
    %v118 = vld [vmem:[%s109 + $0x40] sm:$0xff]
    %v119 = vld [vmem:[%s109 + $0x48] sm:$0xff]
    %v120 = vld [vmem:[%s109 + $0x50] sm:$0xff]
    %v121 = vld [vmem:[%s109 + $0x58] sm:$0xff]
    %v122 = vld [vmem:[%s109 + $0x60] sm:$0xff]
    %v123 = vld [vmem:[%s109 + $0x68] sm:$0xff]
    %v124 = vld [vmem:[%s109 + $0x70] sm:$0xff]
    %v125 = vld [vmem:[%s109 + $0x78] sm:$0xff]
    %126 = vmatpush.msra.mxu0 %v125
    %127 = vmatpush.msra.mxu0 %v124
    %128 = vmatpush.msra.mxu0 %v123
    %129 = vmatpush.msra.mxu0 %v122
    %130 = vmatpush.msra.mxu0 %v121
    %131 = vmatpush.msra.mxu0 %v120
    %132 = vmatpush.msra.mxu0 %v119
    %133 = vmatpush.msra.mxu0 %v118
    %134 = vmatpush.msra.mxu0 %v117
    %135 = vmatpush.msra.mxu0 %v116
    %136 = vmatpush.msra.mxu0 %v115
    %137 = vmatpush.msra.mxu0 %v114
    %138 = vmatpush.msra.mxu0 %v113
    %139 = vmatpush.msra.mxu0 %v112
    %140 = vmatpush.msra.mxu0 %v111
    %141 = vmatpush.msra.mxu0 %v110
    %142 = vmatmul.f32.gmra.mxu0 %v105
    %v143 = vpop.f32.mrf.mxu0
    %v144 = vadd.f32 0.0, %v143
    %145 = vmatmul.f32.gmra.mxu0 %v106
    %v146 = vpop.f32.mrf.mxu0
    %v147 = vadd.f32 0.0, %v146
    %148 = vmatmul.f32.gmra.mxu0 %v107
    %v149 = vpop.f32.mrf.mxu0
    %v150 = vadd.f32 0.0, %v149
    %151 = vmatmul.f32.gmra.mxu0 %v108
    %v152 = vpop.f32.mrf.mxu0
    %v153 = vadd.f32 0.0, %v152
    %154 = vdwg.mxu0
    %155 = vmatpush.msra.mxu0 %v104
    %156 = vmatpush.msra.mxu0 %v103
    %157 = vmatpush.msra.mxu0 %v102
    %158 = vmatpush.msra.mxu0 %v101
    %159 = vmatpush.msra.mxu0 %v100
    %160 = vmatpush.msra.mxu0 %v99
    %161 = vmatpush.msra.mxu0 %v98
    %162 = vmatpush.msra.mxu0 %v97
    %163 = vmatpush.msra.mxu0 %v96
    %164 = vmatpush.msra.mxu0 %v95
    %165 = vmatpush.msra.mxu0 %v94
    %166 = vmatpush.msra.mxu0 %v93
    %167 = vmatpush.msra.mxu0 %v92
    %168 = vmatpush.msra.mxu0 %v91
    %169 = vmatpush.msra.mxu0 %v90
    %170 = vmatpush.msra.mxu0 %v89
    %171 = vmatmul.f32.gmra.mxu0 %v85
    %v172 = vpop.f32.mrf.mxu0
    %v173 = vadd.f32 %v144, %v172
    %174 = vmatmul.f32.gmra.mxu0 %v86
    %v175 = vpop.f32.mrf.mxu0
    %v176 = vadd.f32 %v147, %v175
    %177 = vmatmul.f32.gmra.mxu0 %v87
    %v178 = vpop.f32.mrf.mxu0
    %v179 = vadd.f32 %v150, %v178
    %180 = vmatmul.f32.gmra.mxu0 %v88
    %v181 = vpop.f32.mrf.mxu0
    %v182 = vadd.f32 %v153, %v181
    %183 = vdwg.mxu0
    %v184 = vld [vmem:[#allocation2 + $0x2] sm:$0xff]
    %v185 = vld [vmem:[#allocation2 + $0xa] sm:$0xff]
    %v186 = vld [vmem:[#allocation2 + $0x1a] sm:$0xff]
    %v187 = vld [vmem:[#allocation2 + $0x22] sm:$0xff]
    %s188 = scalar_lea.vmem [#allocation6], 256
    %v189 = vld [vmem:[%s188] sm:$0xff]
    %v190 = vld [vmem:[%s188 + $0x8] sm:$0xff]
    %v191 = vld [vmem:[%s188 + $0x10] sm:$0xff]
    %v192 = vld [vmem:[%s188 + $0x18] sm:$0xff]
    %v193 = vld [vmem:[%s188 + $0x20] sm:$0xff]
    %v194 = vld [vmem:[%s188 + $0x28] sm:$0xff]
    %v195 = vld [vmem:[%s188 + $0x30] sm:$0xff]
    %v196 = vld [vmem:[%s188 + $0x38] sm:$0xff]
    %v197 = vld [vmem:[%s188 + $0x40] sm:$0xff]
    %v198 = vld [vmem:[%s188 + $0x48] sm:$0xff]
    %v199 = vld [vmem:[%s188 + $0x50] sm:$0xff]
    %v200 = vld [vmem:[%s188 + $0x58] sm:$0xff]
    %v201 = vld [vmem:[%s188 + $0x60] sm:$0xff]
    %v202 = vld [vmem:[%s188 + $0x68] sm:$0xff]
    %v203 = vld [vmem:[%s188 + $0x70] sm:$0xff]
    %v204 = vld [vmem:[%s188 + $0x78] sm:$0xff]
    %205 = vmatpush.msra.mxu0 %v204
    %206 = vmatpush.msra.mxu0 %v203
    %207 = vmatpush.msra.mxu0 %v202
    %208 = vmatpush.msra.mxu0 %v201
    %209 = vmatpush.msra.mxu0 %v200
    %210 = vmatpush.msra.mxu0 %v199
    %211 = vmatpush.msra.mxu0 %v198
    %212 = vmatpush.msra.mxu0 %v197
    %213 = vmatpush.msra.mxu0 %v196
    %214 = vmatpush.msra.mxu0 %v195
    %215 = vmatpush.msra.mxu0 %v194
    %216 = vmatpush.msra.mxu0 %v193
    %217 = vmatpush.msra.mxu0 %v192
    %218 = vmatpush.msra.mxu0 %v191
    %219 = vmatpush.msra.mxu0 %v190
    %220 = vmatpush.msra.mxu0 %v189
    %221 = vmatmul.f32.gmra.mxu0 %v184
    %v222 = vpop.f32.mrf.mxu0
    %v223 = vadd.f32 0.0, %v222
    %224 = vmatmul.f32.gmra.mxu0 %v185
    %v225 = vpop.f32.mrf.mxu0
    %v226 = vadd.f32 0.0, %v225
    %227 = vmatmul.f32.gmra.mxu0 %v186
    %v228 = vpop.f32.mrf.mxu0
    %v229 = vadd.f32 0.0, %v228
    %230 = vmatmul.f32.gmra.mxu0 %v187
    %v231 = vpop.f32.mrf.mxu0
    %v232 = vadd.f32 0.0, %v231
    %233 = vdwg.mxu0
    %v234 = vadd.f32 %v173, %v223
    %v235 = vadd.f32 %v176, %v226
    %v236 = vadd.f32 %v179, %v229
    %v237 = vadd.f32 %v182, %v232
    %v238 = vld [vmem:[%s3] sm:$0x1]
    %v240 = vperm.slane %v238, 0
    %v242 = vadd.f32 %v234, %v240
    %v243 = vadd.f32 %v235, %v240
    %v244 = vadd.f32 %v236, %v240
    %v245 = vadd.f32 %v237, %v240
    %v246 = vadd.f32 %v242, %v243
    %v247 = vadd.f32 %v246, %v244
    %v248 = vadd.f32 %v247, %v245
    %v249 = vrot.slane %v248, 4
    %v250 = vadd.f32 %v248, %v249
    %v251 = vrot.slane %v250, 2
    %v252 = vadd.f32 %v250, %v251
    %v253 = vrot.slane %v252, 1
    %v254 = vadd.f32 %v252, %v253
    %v255 = vmul.f32 %v242, %v242
    %v256 = vmul.f32 %v243, %v243
    %v257 = vmul.f32 %v244, %v244
    %v258 = vmul.f32 %v245, %v245
    %v259 = vadd.f32 %v255, %v256
    %v260 = vadd.f32 %v259, %v257
    %v261 = vadd.f32 %v260, %v258
    %v262 = vrot.slane %v261, 4
    %v263 = vadd.f32 %v261, %v262
    %v264 = vrot.slane %v263, 2
    %v265 = vadd.f32 %v263, %v264
    %v266 = vrot.slane %v265, 1
    %v267 = vadd.f32 %v265, %v266
    %v268 = vld [vmem:[#allocation8] sm:$0xff]
    %v269 = vld [vmem:[#allocation8 + $0x8] sm:$0xff]
    %v270 = vld [vmem:[#allocation8 + $0x10] sm:$0xff]
    %v271 = vld [vmem:[#allocation8 + $0x18] sm:$0xff]
    %v272 = vld [vmem:[#allocation8 + $0x20] sm:$0xff]
    %v273 = vld [vmem:[#allocation8 + $0x28] sm:$0xff]
    %v274 = vld [vmem:[#allocation8 + $0x30] sm:$0xff]
    %v275 = vld [vmem:[#allocation8 + $0x38] sm:$0xff]
    %v276 = vld [vmem:[#allocation8 + $0x40] sm:$0xff]
    %v277 = vld [vmem:[#allocation8 + $0x48] sm:$0xff]
    %v278 = vld [vmem:[#allocation8 + $0x50] sm:$0xff]
    %v279 = vld [vmem:[#allocation8 + $0x58] sm:$0xff]
    %v280 = vld [vmem:[#allocation8 + $0x60] sm:$0xff]
    %v281 = vld [vmem:[#allocation8 + $0x68] sm:$0xff]
    %v282 = vld [vmem:[#allocation8 + $0x70] sm:$0xff]
    %v283 = vld [vmem:[#allocation8 + $0x78] sm:$0xff]
    %284 = vmatpush.msra.mxu0 %v283
    %285 = vmatpush.msra.mxu0 %v282
    %286 = vmatpush.msra.mxu0 %v281
    %287 = vmatpush.msra.mxu0 %v280
    %288 = vmatpush.msra.mxu0 %v279
    %289 = vmatpush.msra.mxu0 %v278
    %290 = vmatpush.msra.mxu0 %v277
    %291 = vmatpush.msra.mxu0 %v276
    %292 = vmatpush.msra.mxu0 %v275
    %293 = vmatpush.msra.mxu0 %v274
    %294 = vmatpush.msra.mxu0 %v273
    %295 = vmatpush.msra.mxu0 %v272
    %296 = vmatpush.msra.mxu0 %v271
    %297 = vmatpush.msra.mxu0 %v270
    %298 = vmatpush.msra.mxu0 %v269
    %299 = vmatpush.msra.mxu0 %v268
    %300 = vmatmul.f32.gmra.mxu0 %v254
    %v301 = vpop.f32.mrf.mxu0
    %v302 = vadd.f32 0.0, %v301
    %303 = vdwg.mxu0
    %304 = vmatpush.msra.mxu0 %v283
    %305 = vmatpush.msra.mxu0 %v282
    %306 = vmatpush.msra.mxu0 %v281
    %307 = vmatpush.msra.mxu0 %v280
    %308 = vmatpush.msra.mxu0 %v279
    %309 = vmatpush.msra.mxu0 %v278
    %310 = vmatpush.msra.mxu0 %v277
    %311 = vmatpush.msra.mxu0 %v276
    %312 = vmatpush.msra.mxu0 %v275
    %313 = vmatpush.msra.mxu0 %v274
    %314 = vmatpush.msra.mxu0 %v273
    %315 = vmatpush.msra.mxu0 %v272
    %316 = vmatpush.msra.mxu0 %v271
    %317 = vmatpush.msra.mxu0 %v270
    %318 = vmatpush.msra.mxu0 %v269
    %319 = vmatpush.msra.mxu0 %v268
    %320 = vmatmul.f32.gmra.mxu0 %v267
    %v321 = vpop.f32.mrf.mxu0
    %v322 = vadd.f32 0.0, %v321
    %323 = vdwg.mxu0
    %v324 = vmul.f32 %v302, %v302
    %v325 = vsub.f32 %v322, %v324
    %v326 = vld [vmem:[%s4] sm:$0x1]
    %v327 = vadd.f32 %v325, 1e-05
    %v328 = vrsqrt.pop %v327
    %v329 = vmul.f32 %v328, %v327
    %v330 = vmul.f32 %v329, %v328
    %v331 = vmul.f32 0.5, %v330
    %v332 = vsub.f32 1.5, %v331
    %v333 = vmul.f32 %v328, %v332
    %vm334 = vweird.f32 %v327
    %vm335 = vweird.f32 %v328
    %vm336 = vmor %vm334, %vm335
    %v337 = vsel %vm336, %v328, %v333
    %v338 = vmul.f32 %v326, %v337
    %v339 = vld [vmem:[%s5] sm:$0x1]
    %v340 = vmul.f32 %v302, %v338
    %v341 = vsub.f32 %v339, %v340
    %v343 = vperm.slane %v338, 0
    %v345 = vmul.f32 %v242, %v343
    %v346 = vmul.f32 %v243, %v343
    %v347 = vmul.f32 %v244, %v343
    %v348 = vmul.f32 %v245, %v343
    %v350 = vperm.slane %v341, 0
    %v352 = vadd.f32 %v345, %v350
    %v353 = vadd.f32 %v346, %v350
    %v354 = vadd.f32 %v347, %v350
    %v355 = vadd.f32 %v348, %v350
    %v356 = vmax.f32 %v352, 0.0
    %v357 = vmax.f32 %v353, 0.0
    %v358 = vmax.f32 %v354, 0.0
    %v359 = vmax.f32 %v355, 0.0
    %v360 = vadd.f32 %v356, %v356
    %v361 = vadd.f32 %v357, %v357
    %v362 = vadd.f32 %v358, %v358
    %v363 = vadd.f32 %v359, %v359
    %364 = vst [vmem:[#allocation2 + $0x1] sm:$0xff] %v360
    %365 = vst [vmem:[#allocation2 + $0x9] sm:$0xff] %v361
    %366 = vst [vmem:[#allocation2 + $0x19] sm:$0xff] %v362
    %367 = vst [vmem:[#allocation2 + $0x21] sm:$0xff] %v363
    %v368 = vld [vmem:[#allocation2] sm:$0xff]
    %v369 = vld [vmem:[#allocation2 + $0x8] sm:$0xff]
    %v370 = vld [vmem:[#allocation2 + $0x18] sm:$0xff]
    %v371 = vld [vmem:[#allocation2 + $0x20] sm:$0xff]
    %v372 = vld [vmem:[#allocation6] sm:$0xff]
    %v373 = vld [vmem:[#allocation6 + $0x8] sm:$0xff]
    %v374 = vld [vmem:[#allocation6 + $0x10] sm:$0xff]
    %v375 = vld [vmem:[#allocation6 + $0x18] sm:$0xff]
    %v376 = vld [vmem:[#allocation6 + $0x20] sm:$0xff]
    %v377 = vld [vmem:[#allocation6 + $0x28] sm:$0xff]
    %v378 = vld [vmem:[#allocation6 + $0x30] sm:$0xff]
    %v379 = vld [vmem:[#allocation6 + $0x38] sm:$0xff]
    %v380 = vld [vmem:[#allocation6 + $0x40] sm:$0xff]
    %v381 = vld [vmem:[#allocation6 + $0x48] sm:$0xff]
    %v382 = vld [vmem:[#allocation6 + $0x50] sm:$0xff]
    %v383 = vld [vmem:[#allocation6 + $0x58] sm:$0xff]
    %v384 = vld [vmem:[#allocation6 + $0x60] sm:$0xff]
    %v385 = vld [vmem:[#allocation6 + $0x68] sm:$0xff]
    %v386 = vld [vmem:[#allocation6 + $0x70] sm:$0xff]
    %v387 = vld [vmem:[#allocation6 + $0x78] sm:$0xff]
    %v388 = vld [vmem:[#allocation2 + $0x1] sm:$0xff]
    %v389 = vld [vmem:[#allocation2 + $0x9] sm:$0xff]
    %v390 = vld [vmem:[#allocation2 + $0x19] sm:$0xff]
    %v391 = vld [vmem:[#allocation2 + $0x21] sm:$0xff]
    %v392 = vld [vmem:[%s109] sm:$0xff]
    %v393 = vld [vmem:[%s109 + $0x8] sm:$0xff]
    %v394 = vld [vmem:[%s109 + $0x10] sm:$0xff]
    %v395 = vld [vmem:[%s109 + $0x18] sm:$0xff]
    %v396 = vld [vmem:[%s109 + $0x20] sm:$0xff]
    %v397 = vld [vmem:[%s109 + $0x28] sm:$0xff]
    %v398 = vld [vmem:[%s109 + $0x30] sm:$0xff]
    %v399 = vld [vmem:[%s109 + $0x38] sm:$0xff]
    %v400 = vld [vmem:[%s109 + $0x40] sm:$0xff]
    %v401 = vld [vmem:[%s109 + $0x48] sm:$0xff]
    %v402 = vld [vmem:[%s109 + $0x50] sm:$0xff]
    %v403 = vld [vmem:[%s109 + $0x58] sm:$0xff]
    %v404 = vld [vmem:[%s109 + $0x60] sm:$0xff]
    %v405 = vld [vmem:[%s109 + $0x68] sm:$0xff]
    %v406 = vld [vmem:[%s109 + $0x70] sm:$0xff]
    %v407 = vld [vmem:[%s109 + $0x78] sm:$0xff]
    %408 = vmatpush.msra.mxu0 %v407
    %409 = vmatpush.msra.mxu0 %v406
    %410 = vmatpush.msra.mxu0 %v405
    %411 = vmatpush.msra.mxu0 %v404
    %412 = vmatpush.msra.mxu0 %v403
    %413 = vmatpush.msra.mxu0 %v402
    %414 = vmatpush.msra.mxu0 %v401
    %415 = vmatpush.msra.mxu0 %v400
    %416 = vmatpush.msra.mxu0 %v399
    %417 = vmatpush.msra.mxu0 %v398
    %418 = vmatpush.msra.mxu0 %v397
    %419 = vmatpush.msra.mxu0 %v396
    %420 = vmatpush.msra.mxu0 %v395
    %421 = vmatpush.msra.mxu0 %v394
    %422 = vmatpush.msra.mxu0 %v393
    %423 = vmatpush.msra.mxu0 %v392
    %424 = vmatmul.f32.gmra.mxu0 %v388
    %v425 = vpop.f32.mrf.mxu0
    %v426 = vadd.f32 0.0, %v425
    %427 = vmatmul.f32.gmra.mxu0 %v389
    %v428 = vpop.f32.mrf.mxu0
    %v429 = vadd.f32 0.0, %v428
    %430 = vmatmul.f32.gmra.mxu0 %v390
    %v431 = vpop.f32.mrf.mxu0
    %v432 = vadd.f32 0.0, %v431
    %433 = vmatmul.f32.gmra.mxu0 %v391
    %v434 = vpop.f32.mrf.mxu0
    %v435 = vadd.f32 0.0, %v434
    %436 = vdwg.mxu0
    %437 = vmatpush.msra.mxu0 %v387
    %438 = vmatpush.msra.mxu0 %v386
    %439 = vmatpush.msra.mxu0 %v385
    %440 = vmatpush.msra.mxu0 %v384
    %441 = vmatpush.msra.mxu0 %v383
    %442 = vmatpush.msra.mxu0 %v382
    %443 = vmatpush.msra.mxu0 %v381
    %444 = vmatpush.msra.mxu0 %v380
    %445 = vmatpush.msra.mxu0 %v379
    %446 = vmatpush.msra.mxu0 %v378
    %447 = vmatpush.msra.mxu0 %v377
    %448 = vmatpush.msra.mxu0 %v376
    %449 = vmatpush.msra.mxu0 %v375
    %450 = vmatpush.msra.mxu0 %v374
    %451 = vmatpush.msra.mxu0 %v373
    %452 = vmatpush.msra.mxu0 %v372
    %453 = vmatmul.f32.gmra.mxu0 %v368
    %v454 = vpop.f32.mrf.mxu0
    %v455 = vadd.f32 %v426, %v454
    %456 = vmatmul.f32.gmra.mxu0 %v369
    %v457 = vpop.f32.mrf.mxu0
    %v458 = vadd.f32 %v429, %v457
    %459 = vmatmul.f32.gmra.mxu0 %v370
    %v460 = vpop.f32.mrf.mxu0
    %v461 = vadd.f32 %v432, %v460
    %462 = vmatmul.f32.gmra.mxu0 %v371
    %v463 = vpop.f32.mrf.mxu0
    %v464 = vadd.f32 %v435, %v463
    %465 = vdwg.mxu0
    %v466 = vld [vmem:[#allocation2 + $0x2] sm:$0xff]
    %v467 = vld [vmem:[#allocation2 + $0xa] sm:$0xff]
    %v468 = vld [vmem:[#allocation2 + $0x1a] sm:$0xff]
    %v469 = vld [vmem:[#allocation2 + $0x22] sm:$0xff]
    %v470 = vld [vmem:[%s188] sm:$0xff]
    %v471 = vld [vmem:[%s188 + $0x8] sm:$0xff]
    %v472 = vld [vmem:[%s188 + $0x10] sm:$0xff]
    %v473 = vld [vmem:[%s188 + $0x18] sm:$0xff]
    %v474 = vld [vmem:[%s188 + $0x20] sm:$0xff]
    %v475 = vld [vmem:[%s188 + $0x28] sm:$0xff]
    %v476 = vld [vmem:[%s188 + $0x30] sm:$0xff]
    %v477 = vld [vmem:[%s188 + $0x38] sm:$0xff]
    %v478 = vld [vmem:[%s188 + $0x40] sm:$0xff]
    %v479 = vld [vmem:[%s188 + $0x48] sm:$0xff]
    %v480 = vld [vmem:[%s188 + $0x50] sm:$0xff]
    %v481 = vld [vmem:[%s188 + $0x58] sm:$0xff]
    %v482 = vld [vmem:[%s188 + $0x60] sm:$0xff]
    %v483 = vld [vmem:[%s188 + $0x68] sm:$0xff]
    %v484 = vld [vmem:[%s188 + $0x70] sm:$0xff]
    %v485 = vld [vmem:[%s188 + $0x78] sm:$0xff]
    %486 = vmatpush.msra.mxu0 %v485
    %487 = vmatpush.msra.mxu0 %v484
    %488 = vmatpush.msra.mxu0 %v483
    %489 = vmatpush.msra.mxu0 %v482
    %490 = vmatpush.msra.mxu0 %v481
    %491 = vmatpush.msra.mxu0 %v480
    %492 = vmatpush.msra.mxu0 %v479
    %493 = vmatpush.msra.mxu0 %v478
    %494 = vmatpush.msra.mxu0 %v477
    %495 = vmatpush.msra.mxu0 %v476
    %496 = vmatpush.msra.mxu0 %v475
    %497 = vmatpush.msra.mxu0 %v474
    %498 = vmatpush.msra.mxu0 %v473
    %499 = vmatpush.msra.mxu0 %v472
    %500 = vmatpush.msra.mxu0 %v471
    %501 = vmatpush.msra.mxu0 %v470
    %502 = vmatmul.f32.gmra.mxu0 %v466
    %v503 = vpop.f32.mrf.mxu0
    %v504 = vadd.f32 0.0, %v503
    %505 = vmatmul.f32.gmra.mxu0 %v467
    %v506 = vpop.f32.mrf.mxu0
    %v507 = vadd.f32 0.0, %v506
    %508 = vmatmul.f32.gmra.mxu0 %v468
    %v509 = vpop.f32.mrf.mxu0
    %v510 = vadd.f32 0.0, %v509
    %511 = vmatmul.f32.gmra.mxu0 %v469
    %v512 = vpop.f32.mrf.mxu0
    %v513 = vadd.f32 0.0, %v512
    %514 = vdwg.mxu0
    %v515 = vadd.f32 %v455, %v504
    %v516 = vadd.f32 %v458, %v507
    %v517 = vadd.f32 %v461, %v510
    %v518 = vadd.f32 %v464, %v513
    %v519 = vld [vmem:[%s3] sm:$0x1]
    %v521 = vperm.slane %v519, 0
    %v523 = vadd.f32 %v515, %v521
    %v524 = vadd.f32 %v516, %v521
    %v525 = vadd.f32 %v517, %v521
    %v526 = vadd.f32 %v518, %v521
    %v527 = vadd.f32 %v523, %v524
    %v528 = vadd.f32 %v527, %v525
    %v529 = vadd.f32 %v528, %v526
    %v530 = vrot.slane %v529, 4
    %v531 = vadd.f32 %v529, %v530
    %v532 = vrot.slane %v531, 2
    %v533 = vadd.f32 %v531, %v532
    %v534 = vrot.slane %v533, 1
    %v535 = vadd.f32 %v533, %v534
    %v536 = vmul.f32 %v523, %v523
    %v537 = vmul.f32 %v524, %v524
    %v538 = vmul.f32 %v525, %v525
    %v539 = vmul.f32 %v526, %v526
    %v540 = vadd.f32 %v536, %v537
    %v541 = vadd.f32 %v540, %v538
    %v542 = vadd.f32 %v541, %v539
    %v543 = vrot.slane %v542, 4
    %v544 = vadd.f32 %v542, %v543
    %v545 = vrot.slane %v544, 2
    %v546 = vadd.f32 %v544, %v545
    %v547 = vrot.slane %v546, 1
    %v548 = vadd.f32 %v546, %v547
    %v549 = vld [vmem:[#allocation8] sm:$0xff]
    %v550 = vld [vmem:[#allocation8 + $0x8] sm:$0xff]
    %v551 = vld [vmem:[#allocation8 + $0x10] sm:$0xff]
    %v552 = vld [vmem:[#allocation8 + $0x18] sm:$0xff]
    %v553 = vld [vmem:[#allocation8 + $0x20] sm:$0xff]
    %v554 = vld [vmem:[#allocation8 + $0x28] sm:$0xff]
    %v555 = vld [vmem:[#allocation8 + $0x30] sm:$0xff]
    %v556 = vld [vmem:[#allocation8 + $0x38] sm:$0xff]
    %v557 = vld [vmem:[#allocation8 + $0x40] sm:$0xff]
    %v558 = vld [vmem:[#allocation8 + $0x48] sm:$0xff]
    %v559 = vld [vmem:[#allocation8 + $0x50] sm:$0xff]
    %v560 = vld [vmem:[#allocation8 + $0x58] sm:$0xff]
    %v561 = vld [vmem:[#allocation8 + $0x60] sm:$0xff]
    %v562 = vld [vmem:[#allocation8 + $0x68] sm:$0xff]
    %v563 = vld [vmem:[#allocation8 + $0x70] sm:$0xff]
    %v564 = vld [vmem:[#allocation8 + $0x78] sm:$0xff]
    %565 = vmatpush.msra.mxu0 %v564
    %566 = vmatpush.msra.mxu0 %v563
    %567 = vmatpush.msra.mxu0 %v562
    %568 = vmatpush.msra.mxu0 %v561
    %569 = vmatpush.msra.mxu0 %v560
    %570 = vmatpush.msra.mxu0 %v559
    %571 = vmatpush.msra.mxu0 %v558
    %572 = vmatpush.msra.mxu0 %v557
    %573 = vmatpush.msra.mxu0 %v556
    %574 = vmatpush.msra.mxu0 %v555
    %575 = vmatpush.msra.mxu0 %v554
    %576 = vmatpush.msra.mxu0 %v553
    %577 = vmatpush.msra.mxu0 %v552
    %578 = vmatpush.msra.mxu0 %v551
    %579 = vmatpush.msra.mxu0 %v550
    %580 = vmatpush.msra.mxu0 %v549
    %581 = vmatmul.f32.gmra.mxu0 %v535
    %v582 = vpop.f32.mrf.mxu0
    %v583 = vadd.f32 0.0, %v582
    %584 = vdwg.mxu0
    %585 = vmatpush.msra.mxu0 %v564
    %586 = vmatpush.msra.mxu0 %v563
    %587 = vmatpush.msra.mxu0 %v562
    %588 = vmatpush.msra.mxu0 %v561
    %589 = vmatpush.msra.mxu0 %v560
    %590 = vmatpush.msra.mxu0 %v559
    %591 = vmatpush.msra.mxu0 %v558
    %592 = vmatpush.msra.mxu0 %v557
    %593 = vmatpush.msra.mxu0 %v556
    %594 = vmatpush.msra.mxu0 %v555
    %595 = vmatpush.msra.mxu0 %v554
    %596 = vmatpush.msra.mxu0 %v553
    %597 = vmatpush.msra.mxu0 %v552
    %598 = vmatpush.msra.mxu0 %v551
    %599 = vmatpush.msra.mxu0 %v550
    %600 = vmatpush.msra.mxu0 %v549
    %601 = vmatmul.f32.gmra.mxu0 %v548
    %v602 = vpop.f32.mrf.mxu0
    %v603 = vadd.f32 0.0, %v602
    %604 = vdwg.mxu0
    %v605 = vmul.f32 %v583, %v583
    %v606 = vsub.f32 %v603, %v605
    %v607 = vld [vmem:[%s4] sm:$0x1]
    %v608 = vadd.f32 %v606, 1e-05
    %v609 = vrsqrt.pop %v608
    %v610 = vmul.f32 %v609, %v608
    %v611 = vmul.f32 %v610, %v609
    %v612 = vmul.f32 0.5, %v611
    %v613 = vsub.f32 1.5, %v612
    %v614 = vmul.f32 %v609, %v613
    %vm615 = vweird.f32 %v608
    %vm616 = vweird.f32 %v609
    %vm617 = vmor %vm615, %vm616
    %v618 = vsel %vm617, %v609, %v614
    %v619 = vmul.f32 %v607, %v618
    %v620 = vld [vmem:[%s5] sm:$0x1]
    %v621 = vmul.f32 %v583, %v619
    %v622 = vsub.f32 %v620, %v621
    %v624 = vperm.slane %v619, 0
    %v626 = vmul.f32 %v523, %v624
    %v627 = vmul.f32 %v524, %v624
    %v628 = vmul.f32 %v525, %v624
    %v629 = vmul.f32 %v526, %v624
    %v631 = vperm.slane %v622, 0
    %v633 = vadd.f32 %v626, %v631
    %v634 = vadd.f32 %v627, %v631
    %v635 = vadd.f32 %v628, %v631
    %v636 = vadd.f32 %v629, %v631
    %v637 = vmax.f32 %v633, 0.0
    %v638 = vmax.f32 %v634, 0.0
    %v639 = vmax.f32 %v635, 0.0
    %v640 = vmax.f32 %v636, 0.0
    %641 = vst [vmem:[#allocation9] sm:$0xff] %v637
    %642 = vst [vmem:[#allocation9 + $0x8] sm:$0xff] %v638
    %643 = vst [vmem:[#allocation9 + $0x10] sm:$0xff] %v639
    %644 = vst [vmem:[#allocation9 + $0x18] sm:$0xff] %v640
    // Predicated region
    $region38: #{tpu_custom_call.1} parent=1 // pred_check
      _
    $region39: #{tpu_custom_call.1} parent=1 // pred_check_branch
      %646 = sbr.rel (0) target = $region41
    $region40: #{tpu_custom_call.1} parent=1 // pred_region
      %648 = vsyncadd [#allocation5], 0
      %s649 = sshll.u32 [#allocation9], 4
      %s650 = int_to_ptr.vmem [resolvable:$true] %s649
      %s651 = sshll.u32 %s6, 4
      %s652 = int_to_ptr.hbm [resolvable:$true] %s651
      %657 = dma.vmem_to_hbm [thread:$0]  %s650, 512, %s652, [#allocation5], 128, 128, 8
    $region41: #{tpu_custom_call.1} parent=1 // pred_fallthru
      _
    // Predicated region
    $region42: #{tpu_custom_call.1} parent=1 // pred_check
      _
    $region43: #{tpu_custom_call.1} parent=1 // pred_check_branch
      %659 = sbr.rel (0) target = $region45
    $region44: #{tpu_custom_call.1} parent=1 // pred_region
      %661 = dma.done [#allocation5], 512
    $region45: #{tpu_custom_call.1} parent=1 // pred_fallthru
      _
    %662 = vsyncpa [#allocation4], 1
    %663 = vsyncpa [#allocation7], 1
    %664 = vsyncpa [#allocation5], 1

</llo_original>
